<compile_context>
chip_gen: v7x
topology: tpu7x:2x2x1
jax: 0.10.0
libtpu: 0.0.40
codegen_flags: <defaults>
</compile_context>

<pallas_src>
import functools

import jax
import jax.numpy as jnp
import numpy as np
from jax import lax
from jax.experimental import pallas as pl
from jax.experimental.pallas import tpu as pltpu

NUM_BIN = 4
_MAX_TILE_COLS = 65536      # keeps per-step VMEM well under v7x's 64 MiB / TC
_PAD_LOGIT1 = -1e4          # softplus(-1e4) == 0 exactly -> padded CE is 0


def _cdiv(a, b):
    return -(-a // b)


def _detect_core_splits():
    """Best-effort TensorCore count (v7x has 2 TCs/chip, v5e/v6e have 1)."""
    # TODO(synk): switch to an exact core count from pltpu.get_tpu_info() once
    # the field name is stable; the device_kind check is a conservative proxy.
    try:
        kind = jax.devices()[0].device_kind.lower()
    except Exception:
        return 1
    return 2 if "v7" in kind else 1


def _multibin_kernel(x_ref, out_ref, cls_acc, reg_acc, cnt_acc, *, sub):
    """One (6*sub, tile_c) channel-stacked tile, fully sublane-packed."""
    step = pl.program_id(1)

    @pl.when(step == 0)
    def _init():
        cls_acc[...] = jnp.zeros_like(cls_acc)
        reg_acc[...] = jnp.zeros_like(reg_acc)
        cnt_acc[...] = jnp.zeros_like(cnt_acc)

    # Static, sublane-aligned slices of the single stacked input block.
    l0 = x_ref[pl.ds(0 * sub, sub), :].astype(jnp.float32)
    l1 = x_ref[pl.ds(1 * sub, sub), :].astype(jnp.float32)
    osn = x_ref[pl.ds(2 * sub, sub), :].astype(jnp.float32)
    ocs = x_ref[pl.ds(3 * sub, sub), :].astype(jnp.float32)
    lbl = x_ref[pl.ds(4 * sub, sub), :].astype(jnp.float32)
    ang = x_ref[pl.ds(5 * sub, sub), :].astype(jnp.float32)

    # 2-class cross entropy, labels assumed exactly {0,1} (as in the module):
    #   ce = logsumexp([l0, l1]) - l_target = softplus(l_other - l_target)
    # with d = (l1 - l0) * (1 - 2*lbl).  Padded columns (l0=0, l1=-1e4, lbl=0)
    # give ce == 0 exactly, so no mask is needed.
    d = (l1 - l0) * (1.0 - 2.0 * lbl)
    ce = jnp.maximum(d, 0.0) + jnp.log(1.0 + jnp.exp(-jnp.abs(d)))
    cls_acc[...] += ce

    # Regression: L2-normalize the (sin, cos) head, L1 vs (sin, cos) of angle.
    # valid == lbl (labels in {0,1}); padded columns have lbl == 0.
    inv = lax.rsqrt(jnp.maximum(osn * osn + ocs * ocs, 1e-24))
    l1_err = (jnp.abs(osn * inv - jnp.sin(ang))
              + jnp.abs(ocs * inv - jnp.cos(ang)))
    reg_acc[...] += l1_err * lbl
    cnt_acc[...] += lbl

    # One cross-lane/sublane reduce per split, only on the last step, written
    # to a full lane-dense (1, 8, 128) output block (no masked partial store).
    @pl.when(step == pl.num_programs(1) - 1)
    def _finalize():
        cls_t = jnp.sum(cls_acc[...])
        reg_t = jnp.sum(reg_acc[...])
        cnt_t = jnp.sum(cnt_acc[...])
        r = lax.broadcasted_iota(jnp.int32, (1, 8, 128), 1)
        c = lax.broadcasted_iota(jnp.int32, (1, 8, 128), 2)
        row0 = r == 0
        out_ref[...] = jnp.where(row0 & (c == 0), cls_t,
                       jnp.where(row0 & (c == 1), reg_t,
                       jnp.where(row0 & (c == 2), cnt_t, 0.0)))


@functools.partial(jax.jit,
                   static_argnames=("num_bin", "tile_cols", "core_splits"))
def multibin_loss(source, target, num_bin=NUM_BIN, tile_cols=32768,
                  core_splits=None):
    """Pallas implementation of MultiBinLoss.forward(source, target)."""
    tgt2d = target.reshape(-1, target.shape[-1])
    n = tgt2d.shape[0]
    assert source.shape == (n, 4 * num_bin)
    assert tgt2d.shape[1] == 2 * num_bin

    # Inputs may be bf16 (halves HBM bytes; keep angles f32 if sin/cos
    # precision matters) -- the sublane fold adapts to the element size.
    dt = jnp.result_type(source.dtype, tgt2d.dtype)
    itemsize = jnp.dtype(dt).itemsize
    sub = max(8, 32 // itemsize)          # rows per channel: 8 f32 / 16 bf16

    n_split = _detect_core_splits() if core_splits is None else int(core_splits)
    n_split = max(1, min(2, n_split))

    # ---- column tiling of the folded (sub, cols) layout ----
    e = num_bin * n                       # bin-elements per channel stream
    cols_min = _cdiv(e, sub)
    tile_c = min(int(tile_cols), _MAX_TILE_COLS, _cdiv(cols_min, 128) * 128)
    tile_c = max(128, _cdiv(tile_c, 128) * 128)
    tiles_per_split = _cdiv(cols_min, n_split * tile_c)
    cols_total = n_split * tiles_per_split * tile_c
    e_pad = cols_total * sub

    # ---- layout plumbing (fuses into one XLA pass under this jit) ----
    src_t = source.T                      # (4*num_bin, n)
    tgt_t = tgt2d.T                       # (2*num_bin, n)

    def prep(a2d, pad_val):
        a = a2d.astype(dt).reshape(-1)    # bin-major flatten (order-invariant)
        a = jnp.pad(a, (0, e_pad - e), constant_values=pad_val)
        return a.reshape(sub, cols_total)

    stacked = jnp.concatenate([
        prep(src_t[0:2 * num_bin:2], 0.0),           # logit0
        prep(src_t[1:2 * num_bin:2], _PAD_LOGIT1),   # logit1 (pad -> ce == 0)
        prep(src_t[2 * num_bin::2], 0.0),            # sin head
        prep(src_t[2 * num_bin + 1::2], 0.0),        # cos head
        prep(tgt_t[:num_bin], 0.0),                  # labels (pad -> valid 0)
        prep(tgt_t[num_bin:2 * num_bin], 0.0),       # angles
    ], axis=0)                                       # (6*sub, cols_total)

    # VMEM budget: stacked input double-buffered + 3 f32 accumulators.
    in_block_bytes = 6 * sub * tile_c * itemsize
    acc_bytes = 3 * sub * tile_c * 4
    vmem_need = 2 * in_block_bytes + acc_bytes + (2 << 20)
    vmem_limit = int(min(max(int(vmem_need * 1.25), 32 << 20), 56 << 20))

    row_spec = pl.BlockSpec((6 * sub, tile_c),
                            lambda s, t: (0, s * tiles_per_split + t))

    parts = pl.pallas_call(
        functools.partial(_multibin_kernel, sub=sub),
        out_shape=jax.ShapeDtypeStruct((n_split, 8, 128), jnp.float32),
        grid_spec=pltpu.PrefetchScalarGridSpec(
            num_scalar_prefetch=0,
            grid=(n_split, tiles_per_split),
            in_specs=[row_spec],
            out_specs=pl.BlockSpec((1, 8, 128), lambda s, t: (s, 0, 0)),
            scratch_shapes=[pltpu.VMEM((sub, tile_c), jnp.float32)] * 3,
        ),
        compiler_params=pltpu.CompilerParams(
            dimension_semantics=(
                pltpu.CORE_PARALLEL if n_split > 1 else pltpu.ARBITRARY,
                pltpu.ARBITRARY),
            vmem_limit_bytes=vmem_limit),
    )(stacked)

    # Tiny epilogue in plain JAX (cls/(n*nb) + reg/cnt is not additive in
    # per-split partials, so combine raw sums here).
    cls_total = jnp.sum(parts[:, 0, 0])
    reg_total = jnp.sum(parts[:, 0, 1])
    cnt_total = jnp.sum(parts[:, 0, 2])
    cls_loss = cls_total / jnp.float32(n * num_bin)
    # TODO(synk): PyTorch raises ZeroDivisionError when no bin has any valid
    # row; here we guard and drop the regression term in that (undefined) case.
    reg_loss = jnp.where(cnt_total > 0.0,
                         reg_total / jnp.maximum(cnt_total, 1.0), 0.0)
    return cls_loss + reg_loss


def multibin_loss_ref(source, target, num_bin=NUM_BIN):
    """Pure-JAX reference mirroring the PyTorch module."""
    target = target.reshape(-1, target.shape[-1]).astype(jnp.float32)
    source = source.astype(jnp.float32)
    cls_losses = 0.0
    reg_losses = 0.0
    reg_nums = 0.0
    for i in range(num_bin):
        logits = source[:, i * 2:i * 2 + 2]
        lbl = (target[:, i] > 0.5).astype(jnp.int32)
        lse = jax.nn.logsumexp(logits, axis=1)
        picked = jnp.take_along_axis(logits, lbl[:, None], axis=1)[:, 0]
        ce = lse - picked
        cls_losses = cls_losses + jnp.mean(ce)
        valid = (target[:, i] == 1.0).astype(jnp.float32)
        s = num_bin * 2 + i * 2
        off = source[:, s:s + 2]
        norm = jnp.maximum(jnp.linalg.norm(off, axis=1, keepdims=True), 1e-12)
        off = off / norm
        l1 = (jnp.abs(off[:, 0] - jnp.sin(target[:, num_bin + i]))
              + jnp.abs(off[:, 1] - jnp.cos(target[:, num_bin + i])))
        reg_losses = reg_losses + jnp.sum(l1 * valid)
        reg_nums = reg_nums + jnp.sum(valid)
    return cls_losses / num_bin + reg_losses / reg_nums


if __name__ == "__main__":
    key = jax.random.PRNGKey(0)
    k_src, k_lbl, k_ang, k2_src, k2_lbl, k2_ang = jax.random.split(key, 6)

    # Test 1: small shapes consistent with the module's forward.
    B, M = 2, 16                    # target viewed as (-1, 2*num_bin) -> N = 32
    N = B * M
    source = jax.random.normal(k_src, (N, 4 * NUM_BIN), dtype=jnp.float32)
    labels = jax.random.bernoulli(k_lbl, 0.5, (B, M, NUM_BIN)).astype(jnp.float32)
    angles = jax.random.uniform(k_ang, (B, M, NUM_BIN), dtype=jnp.float32,
                                minval=-np.pi, maxval=np.pi)
    target = jnp.concatenate([labels, angles], axis=-1)      # (2, 16, 8)

    out = jax.block_until_ready(multibin_loss(source, target))
    ref = jax.block_until_ready(multibin_loss_ref(source, target))
    np.testing.assert_allclose(np.asarray(out), np.asarray(ref),
                               rtol=1e-4, atol=1e-4)

    # Test 2: non-aligned N with multiple grid steps (exercises the pad-value
    # trick and cross-tile accumulation).
    N2 = 700
    source2 = jax.random.normal(k2_src, (N2, 4 * NUM_BIN), dtype=jnp.float32)
    labels2 = jax.random.bernoulli(k2_lbl, 0.5, (N2, NUM_BIN)).astype(jnp.float32)
    angles2 = jax.random.uniform(k2_ang, (N2, NUM_BIN), dtype=jnp.float32,
                                 minval=-np.pi, maxval=np.pi)
    target2 = jnp.concatenate([labels2, angles2], axis=-1)    # (700, 8)

    out2 = jax.block_until_ready(multibin_loss(source2, target2, tile_cols=256))
    ref2 = jax.block_until_ready(multibin_loss_ref(source2, target2))
    np.testing.assert_allclose(np.asarray(out2), np.asarray(ref2),
                               rtol=1e-4, atol=1e-4)

    print("KERNEL_OK")
</pallas_src>

<mosaic_0001>
module attributes {stable_mosaic.version = 11 : i64} {
  func.func @_multibin_kernel(%arg0: i32, %arg1: i32, %arg2: memref<48x128xf32, #tpu.memory_space<vmem>>, %arg3: memref<1x8x128xf32, #tpu.memory_space<vmem>>, %arg4: memref<8x128xf32, #tpu.memory_space<vmem>>, %arg5: memref<8x128xf32, #tpu.memory_space<vmem>>, %arg6: memref<8x128xf32, #tpu.memory_space<vmem>>) attributes {dimension_semantics = [#tpu.dimension_semantics<arbitrary>, #tpu.dimension_semantics<arbitrary>], iteration_bounds = array<i64: 1, 1>, scalar_prefetch = 0 : i64, scratch_operands = 3 : i64, tpu.core_type = #tpu.core_type<tc>, window_params = [{transform_indices = @transform_0, window_bounds = array<i64: 48, 128>}, {transform_indices = @transform_1, window_bounds = array<i64: 1, 8, 128>}]} {
    %c0_i32 = arith.constant 0 : i32
    %0 = arith.cmpi eq, %arg1, %c0_i32 : i32
    %1 = arith.extui %0 : i1 to i32
    %c0_i32_0 = arith.constant 0 : i32
    %2 = arith.cmpi ne, %1, %c0_i32_0 : i32
    scf.if %2 {
      %cst_26 = arith.constant 0.000000e+00 : f32
      %53 = vector.broadcast %cst_26 : f32 to vector<8x128xf32>
      %c0_27 = arith.constant 0 : index
      %c0_28 = arith.constant 0 : index
      %54 = vector.load %arg4[%c0_27, %c0_28] : memref<8x128xf32, #tpu.memory_space<vmem>>, vector<8x128xf32>
      tpu.vector_store %arg4[%c0_27, %c0_28], %53 {strides = array<i32>} : memref<8x128xf32, #tpu.memory_space<vmem>>, vector<8x128xf32>,
      %cst_29 = arith.constant 0.000000e+00 : f32
      %55 = vector.broadcast %cst_29 : f32 to vector<8x128xf32>
      %c0_30 = arith.constant 0 : index
      %c0_31 = arith.constant 0 : index
      %56 = vector.load %arg5[%c0_30, %c0_31] : memref<8x128xf32, #tpu.memory_space<vmem>>, vector<8x128xf32>
      tpu.vector_store %arg5[%c0_30, %c0_31], %55 {strides = array<i32>} : memref<8x128xf32, #tpu.memory_space<vmem>>, vector<8x128xf32>,
      %cst_32 = arith.constant 0.000000e+00 : f32
      %57 = vector.broadcast %cst_32 : f32 to vector<8x128xf32>
      %c0_33 = arith.constant 0 : index
      %c0_34 = arith.constant 0 : index
      %58 = vector.load %arg6[%c0_33, %c0_34] : memref<8x128xf32, #tpu.memory_space<vmem>>, vector<8x128xf32>
      tpu.vector_store %arg6[%c0_33, %c0_34], %57 {strides = array<i32>} : memref<8x128xf32, #tpu.memory_space<vmem>>, vector<8x128xf32>,
    } else {
    }
    %c0 = arith.constant 0 : index
    %c0_1 = arith.constant 0 : index
    %3 = vector.load %arg2[%c0, %c0_1] : memref<48x128xf32, #tpu.memory_space<vmem>>, vector<8x128xf32>
    %c8 = arith.constant 8 : index
    %c0_2 = arith.constant 0 : index
    %4 = vector.load %arg2[%c8, %c0_2] : memref<48x128xf32, #tpu.memory_space<vmem>>, vector<8x128xf32>
    %c16 = arith.constant 16 : index
    %c0_3 = arith.constant 0 : index
    %5 = vector.load %arg2[%c16, %c0_3] : memref<48x128xf32, #tpu.memory_space<vmem>>, vector<8x128xf32>
    %c24 = arith.constant 24 : index
    %c0_4 = arith.constant 0 : index
    %6 = vector.load %arg2[%c24, %c0_4] : memref<48x128xf32, #tpu.memory_space<vmem>>, vector<8x128xf32>
    %c32 = arith.constant 32 : index
    %c0_5 = arith.constant 0 : index
    %7 = vector.load %arg2[%c32, %c0_5] : memref<48x128xf32, #tpu.memory_space<vmem>>, vector<8x128xf32>
    %c40 = arith.constant 40 : index
    %c0_6 = arith.constant 0 : index
    %8 = vector.load %arg2[%c40, %c0_6] : memref<48x128xf32, #tpu.memory_space<vmem>>, vector<8x128xf32>
    %9 = arith.subf %4, %3 : vector<8x128xf32>
    %cst = arith.constant 2.000000e+00 : f32
    %10 = vector.broadcast %cst : f32 to vector<8x128xf32>
    %11 = arith.mulf %10, %7 : vector<8x128xf32>
    %cst_7 = arith.constant 1.000000e+00 : f32
    %12 = vector.broadcast %cst_7 : f32 to vector<8x128xf32>
    %13 = arith.subf %12, %11 : vector<8x128xf32>
    %14 = arith.mulf %9, %13 : vector<8x128xf32>
    %cst_8 = arith.constant 0.000000e+00 : f32
    %15 = vector.broadcast %cst_8 : f32 to vector<8x128xf32>
    %16 = arith.maximumf %14, %15 : vector<8x128xf32>
    %17 = math.absf %14 : vector<8x128xf32>
    %cst_9 = arith.constant 0.000000e+00 : f32
    %18 = vector.broadcast %cst_9 : f32 to vector<8x128xf32>
    %19 = arith.subf %18, %17 : vector<8x128xf32>
    %20 = math.exp %19 : vector<8x128xf32>
    %cst_10 = arith.constant 1.000000e+00 : f32
    %21 = vector.broadcast %cst_10 : f32 to vector<8x128xf32>
    %22 = arith.addf %21, %20 : vector<8x128xf32>
    %23 = math.log %22 : vector<8x128xf32>
    %24 = arith.addf %16, %23 : vector<8x128xf32>
    %c0_11 = arith.constant 0 : index
    %c0_12 = arith.constant 0 : index
    %25 = vector.load %arg4[%c0_11, %c0_12] : memref<8x128xf32, #tpu.memory_space<vmem>>, vector<8x128xf32>
    %26 = arith.addf %25, %24 : vector<8x128xf32>
    %c0_13 = arith.constant 0 : index
    %c0_14 = arith.constant 0 : index
    %27 = vector.load %arg4[%c0_13, %c0_14] : memref<8x128xf32, #tpu.memory_space<vmem>>, vector<8x128xf32>
    tpu.vector_store %arg4[%c0_13, %c0_14], %26 {strides = array<i32>} : memref<8x128xf32, #tpu.memory_space<vmem>>, vector<8x128xf32>,
    %28 = arith.mulf %5, %5 : vector<8x128xf32>
    %29 = arith.mulf %6, %6 : vector<8x128xf32>
    %30 = arith.addf %28, %29 : vector<8x128xf32>
    %cst_15 = arith.constant 1.000000e-24 : f32
    %31 = vector.broadcast %cst_15 : f32 to vector<8x128xf32>
    %32 = arith.maximumf %30, %31 : vector<8x128xf32>
    %33 = math.rsqrt %32 : vector<8x128xf32>
    %34 = arith.mulf %5, %33 : vector<8x128xf32>
    %35 = math.sin %8 : vector<8x128xf32>
    %36 = arith.subf %34, %35 : vector<8x128xf32>
    %37 = math.absf %36 : vector<8x128xf32>
    %38 = arith.mulf %6, %33 : vector<8x128xf32>
    %39 = math.cos %8 : vector<8x128xf32>
    %40 = arith.subf %38, %39 : vector<8x128xf32>
    %41 = math.absf %40 : vector<8x128xf32>
    %42 = arith.addf %37, %41 : vector<8x128xf32>
    %c0_16 = arith.constant 0 : index
    %c0_17 = arith.constant 0 : index
    %43 = vector.load %arg5[%c0_16, %c0_17] : memref<8x128xf32, #tpu.memory_space<vmem>>, vector<8x128xf32>
    %44 = arith.mulf %42, %7 : vector<8x128xf32>
    %45 = arith.addf %43, %44 : vector<8x128xf32>
    %c0_18 = arith.constant 0 : index
    %c0_19 = arith.constant 0 : index
    %46 = vector.load %arg5[%c0_18, %c0_19] : memref<8x128xf32, #tpu.memory_space<vmem>>, vector<8x128xf32>
    tpu.vector_store %arg5[%c0_18, %c0_19], %45 {strides = array<i32>} : memref<8x128xf32, #tpu.memory_space<vmem>>, vector<8x128xf32>,
    %c0_20 = arith.constant 0 : index
    %c0_21 = arith.constant 0 : index
    %47 = vector.load %arg6[%c0_20, %c0_21] : memref<8x128xf32, #tpu.memory_space<vmem>>, vector<8x128xf32>
    %48 = arith.addf %47, %7 : vector<8x128xf32>
    %c0_22 = arith.constant 0 : index
    %c0_23 = arith.constant 0 : index
    %49 = vector.load %arg6[%c0_22, %c0_23] : memref<8x128xf32, #tpu.memory_space<vmem>>, vector<8x128xf32>
    tpu.vector_store %arg6[%c0_22, %c0_23], %48 {strides = array<i32>} : memref<8x128xf32, #tpu.memory_space<vmem>>, vector<8x128xf32>,
    %c0_i32_24 = arith.constant 0 : i32
    %50 = arith.cmpi eq, %arg1, %c0_i32_24 : i32
    %51 = arith.extui %50 : i1 to i32
    %c0_i32_25 = arith.constant 0 : i32
    %52 = arith.cmpi ne, %51, %c0_i32_25 : i32
    scf.if %52 {
      %c0_26 = arith.constant 0 : index
      %c0_27 = arith.constant 0 : index
      %53 = vector.load %arg4[%c0_26, %c0_27] : memref<8x128xf32, #tpu.memory_space<vmem>>, vector<8x128xf32>
      %54 = vector.shape_cast %53 : vector<8x128xf32> to vector<1x8x128xf32>
      %cst_28 = arith.constant dense<0.000000e+00> : vector<1xf32>
      %55 = vector.multi_reduction <add>, %54, %cst_28 [1, 2] : vector<1x8x128xf32> to vector<1xf32>
      %56 = vector.shape_cast %55 : vector<1xf32> to vector<1x1x1xf32>
      %57 = vector.extract %56[0, 0, 0] : f32 from vector<1x1x1xf32>
      %c0_29 = arith.constant 0 : index
      %c0_30 = arith.constant 0 : index
      %58 = vector.load %arg5[%c0_29, %c0_30] : memref<8x128xf32, #tpu.memory_space<vmem>>, vector<8x128xf32>
      %59 = vector.shape_cast %58 : vector<8x128xf32> to vector<1x8x128xf32>
      %cst_31 = arith.constant dense<0.000000e+00> : vector<1xf32>
      %60 = vector.multi_reduction <add>, %59, %cst_31 [1, 2] : vector<1x8x128xf32> to vector<1xf32>
      %61 = vector.shape_cast %60 : vector<1xf32> to vector<1x1x1xf32>
      %62 = vector.extract %61[0, 0, 0] : f32 from vector<1x1x1xf32>
      %c0_32 = arith.constant 0 : index
      %c0_33 = arith.constant 0 : index
      %63 = vector.load %arg6[%c0_32, %c0_33] : memref<8x128xf32, #tpu.memory_space<vmem>>, vector<8x128xf32>
      %64 = vector.shape_cast %63 : vector<8x128xf32> to vector<1x8x128xf32>
      %cst_34 = arith.constant dense<0.000000e+00> : vector<1xf32>
      %65 = vector.multi_reduction <add>, %64, %cst_34 [1, 2] : vector<1x8x128xf32> to vector<1xf32>
      %66 = vector.shape_cast %65 : vector<1xf32> to vector<1x1x1xf32>
      %67 = vector.extract %66[0, 0, 0] : f32 from vector<1x1x1xf32>
      %68 = tpu.iota {dimensions = array<i32: 1>} : vector<1x8x128xi32>
      %69 = tpu.iota {dimensions = array<i32: 2>} : vector<1x8x128xi32>
      %c0_i32_35 = arith.constant 0 : i32
      %70 = vector.broadcast %c0_i32_35 : i32 to vector<1x8x128xi32>
      %71 = arith.cmpi eq, %68, %70 : vector<1x8x128xi32>
      %c0_i32_36 = arith.constant 0 : i32
      %72 = vector.broadcast %c0_i32_36 : i32 to vector<1x8x128xi32>
      %73 = arith.cmpi eq, %69, %72 : vector<1x8x128xi32>
      %74 = arith.andi %71, %73 : vector<1x8x128xi1>
      %c1_i32 = arith.constant 1 : i32
      %75 = vector.broadcast %c1_i32 : i32 to vector<1x8x128xi32>
      %76 = arith.cmpi eq, %69, %75 : vector<1x8x128xi32>
      %77 = arith.andi %71, %76 : vector<1x8x128xi1>
      %c2_i32 = arith.constant 2 : i32
      %78 = vector.broadcast %c2_i32 : i32 to vector<1x8x128xi32>
      %79 = arith.cmpi eq, %69, %78 : vector<1x8x128xi32>
      %80 = arith.andi %71, %79 : vector<1x8x128xi1>
      %cst_37 = arith.constant 0.000000e+00 : f32
      %81 = vector.broadcast %67 : f32 to vector<1x8x128xf32>
      %82 = vector.broadcast %cst_37 : f32 to vector<1x8x128xf32>
      %83 = arith.select %80, %81, %82 : vector<1x8x128xi1>, vector<1x8x128xf32>
      %84 = vector.broadcast %62 : f32 to vector<1x8x128xf32>
      %85 = arith.select %77, %84, %83 : vector<1x8x128xi1>, vector<1x8x128xf32>
      %86 = vector.broadcast %57 : f32 to vector<1x8x128xf32>
      %87 = arith.select %74, %86, %85 : vector<1x8x128xi1>, vector<1x8x128xf32>
      %c0_38 = arith.constant 0 : index
      %c0_39 = arith.constant 0 : index
      %c0_40 = arith.constant 0 : index
      %88 = vector.load %arg3[%c0_38, %c0_39, %c0_40] : memref<1x8x128xf32, #tpu.memory_space<vmem>>, vector<1x8x128xf32>
      tpu.vector_store %arg3[%c0_38, %c0_39, %c0_40], %87 {strides = array<i32>} : memref<1x8x128xf32, #tpu.memory_space<vmem>>, vector<1x8x128xf32>,
    } else {
    }
    return
  }
  func.func @transform_0(%arg0: i32, %arg1: i32) -> (i32, i32) {
    %c1_i32 = arith.constant 1 : i32
    %0 = arith.muli %arg0, %c1_i32 : i32
    %1 = arith.addi %0, %arg1 : i32
    %c0_i32 = arith.constant 0 : i32
    %c0_i32_0 = arith.constant 0 : i32
    return %c0_i32, %1 : i32, i32
  }
  func.func @transform_1(%arg0: i32, %arg1: i32) -> (i32, i32, i32) {
    %c0_i32 = arith.constant 0 : i32
    %c0_i32_0 = arith.constant 0 : i32
    %c0_i32_1 = arith.constant 0 : i32
    return %arg0, %c0_i32, %c0_i32_0 : i32, i32, i32
  }
}

</mosaic_0001>

<llo_original>
// kernel: multibin_loss.1
$region0: #{multibin_loss.1}
  #allocation0 [shape = 'u32[]', space=smem, size = 0x4, offset = 0x4, fixed_abs, tag = 'smem constant byte address 0x4 - core index']
  #allocation1 [shape = 'u32[144,128]{1,0:T(1,128)}', space=vmem, size = 0x12000, scoped, tag = 'internal scratch']
  #allocation2 [shape = 'f32[8,128]{1,0:T(8,128)}', space=vmem, size = 0x1000, scoped, tag = 'scratch operand']
  #allocation3 [shape = 'f32[8,128]{1,0:T(8,128)}', space=vmem, size = 0x1000, scoped, tag = 'scratch operand']
  #allocation4 [shape = 'f32[8,128]{1,0:T(8,128)}', space=vmem, size = 0x1000, scoped, tag = 'scratch operand']
  %s0 = inlined_call_operand.vmem [shape: f32[48,128], index: 0, kind: input, shape index: {}]
  %s1 = inlined_call_operand.vmem [shape: f32[1,8,128], index: 1, kind: output, shape index: {}]
  %s2 = sld [smem:[#allocation0]]
  $region22: #{multibin_loss.1} parent=0
    _
  %s4 = ssub.s32 1, %s2
  %s5 = scalar_select 0, %s4, %s2
  // Predicated region
  $region2: #{multibin_loss.1} parent=0 // pred_check
    _
  $region3: #{multibin_loss.1} parent=0 // pred_check_branch
    %7 = sbr.rel (0) target = $region5
  $region4: #{multibin_loss.1} parent=0 // pred_region
    %s8 = sadd.s32 0, 0
    %p9 = scmp.lt.s32.totalorder %s8, 0
    %s10 = scalar_select %p9, %s8, 0
    %s11 = smul.addr %s10, 8
    %s12 = scalar_lea.vmem %s0, %s11
    %s13 = sadd.s32 0, 0
  $region5: #{multibin_loss.1} parent=0 // pred_fallthru
    _
  %s14 = sadd.s32 0, 0
  %p15 = scmp.lt.s32.totalorder %s14, 0
  %s16 = scalar_select %p15, %s14, 0
  %s17 = smul.addr %s16, 8
  %s18 = scalar_lea.vmem %s0, %s17
  %s19 = sadd.s32 0, 0
  %p20 = scmp.lt.s32.totalorder %s19, 0
  %s21 = scalar_select %p20, %s19, 0
  %s22 = smul.addr %s21, 8
  %s23 = scalar_lea.vmem %s0, %s22
  %s24 = sadd.s32 0, 0
  %p25 = scmp.eq.s32.totalorder 0, 0
  // Predicated region
  $region6: #{multibin_loss.1} parent=0 // pred_check
    %p26 = pneg %p25
  $region7: #{multibin_loss.1} parent=0 // pred_check_branch
    %28 = sbr.rel (%p26) target = $region9
  $region8: #{multibin_loss.1} parent=0 // pred_region
    %29 = vst [vmem:[#allocation2] sm:$0xff] 0.0
    %30 = vst [vmem:[#allocation3] sm:$0xff] 0.0
    %31 = vst [vmem:[#allocation4] sm:$0xff] 0.0
  $region9: #{multibin_loss.1} parent=0 // pred_fallthru
    _
  %v32 = vld [vmem:[%s23] sm:$0xff]
  %v33 = vld [vmem:[%s23 + $0x8] sm:$0xff]
  %v34 = vld [vmem:[%s23 + $0x10] sm:$0xff]
  %v35 = vld [vmem:[%s23 + $0x18] sm:$0xff]
  %v36 = vld [vmem:[%s23 + $0x20] sm:$0xff]
  %v37 = vld [vmem:[%s23 + $0x28] sm:$0xff]
  %v38 = vsub.f32 %v33, %v32
  %v39 = vmul.f32 %v36, 2.0
  %v40 = vsub.f32 1.0, %v39
  %v41 = vmul.f32 %v38, %v40
  %v42 = vmax.f32 %v41, 0.0
  %v43 = vand.u32 2147483647, %v41
  %v44 = vsub.f32 0.0, %v43
  %v45 = vmul.f32 %v44, 1.442695
  %v46 = vpow.pop %v45
  %v47 = vadd.f32 %v46, 1.0
  %v48 = vlog2.pop %v47
  %v49 = vmul.f32 %v48, 0.6931472
  %v50 = vadd.f32 %v42, %v49
  %v51 = vld [vmem:[#allocation2] sm:$0xff]
  %v52 = vadd.f32 %v51, %v50
  %53 = vst [vmem:[#allocation2] sm:$0xff] %v52
  %v54 = vmul.f32 %v34, %v34
  %v55 = vmul.f32 %v35, %v35
  %v56 = vadd.f32 %v54, %v55
  %v57 = vmax.f32 %v56, 1e-24
  %v58 = vrsqrt.pop %v57
  %v59 = vmul.f32 %v34, %v58
  %v60 = vand.u32 2147483647, %v37
  %vm61 = vcmp.le.f32.partialorder %v60, 0.7853982
  %vm62 = vcmp.lt.s32.totalorder %v37, 0
  %v63 = vand.u32 %v37, 2139095040
  %v64 = vshrl.u32 %v63, 23
  %v65 = vsub.s32 %v64, 127
  %v66 = vand.u32 2147483647, %v37
  %v67 = vand.u32 %v66, 8388607
  %v68 = vor.u32 %v67, 8388608
  %v69 = vsub.s32 0, %v68
  %v70 = vadd.s32 %v65, 1
  %vm71 = vcmp.gt.s32.totalorder %v70, 0
  %v72 = vsel %vm71, %v70, 0
  %v73 = vshrl.u32 %v72, 5
  %v74 = vand.u32 %v72, 31
  %v75 = vsub.s32 32, %v74
  %v76 = vshrl.u32 683565275, %v75
  %v77 = vshll.u32 683565275, %v74
  %v78 = vshrl.u32 2475754826, %v75
  %v79 = vor.u32 %v77, %v78
  %v80 = vshll.u32 2475754826, %v74
  %v81 = vshrl.u32 2131351028, %v75
  %v82 = vor.u32 %v80, %v81
  %v83 = vshll.u32 2131351028, %v74
  %v84 = vshrl.u32 2102212464, %v75
  %v85 = vor.u32 %v83, %v84
  %v86 = vshll.u32 2102212464, %v74
  %v87 = vshrl.u32 920167782, %v75
  %v88 = vor.u32 %v86, %v87
  %v89 = vshll.u32 920167782, %v74
  %v90 = vshrl.u32 1326507024, %v75
  %v91 = vor.u32 %v89, %v90
  %vm92 = vcmp.lt.s32.totalorder %v73, 1
  %vm93 = vcmp.lt.s32.totalorder %v73, 2
  %vm94 = vcmp.lt.s32.totalorder %v73, 3
  %vm95 = vcmp.lt.s32.totalorder %v73, 4
  %v96 = vsel %vm92, %v76, %v79
  %v97 = vsel %vm95, %v85, 2102212464
  %v98 = vsel %vm94, %v82, %v97
  %v99 = vsel %vm93, %v96, %v98
  %v100 = vsel %vm92, %v79, %v82
  %v101 = vsel %vm95, %v88, 920167782
  %v102 = vsel %vm94, %v85, %v101
  %v103 = vsel %vm93, %v100, %v102
  %v104 = vsel %vm92, %v82, %v85
  %v105 = vsel %vm95, %v91, 1326507024
  %v106 = vsel %vm94, %v88, %v105
  %v107 = vsel %vm93, %v104, %v106
  %v108 = vshll.u32 %v68, 8
  %v109 = vmul.u32.u64.compose %v108, %v107
  %v110 = vextract.low.u32 %v109
  %v111 = vextract.high.u32 %v109
  %v112 = vmul.u32.u64.compose %v108, %v103
  %v113 = vextract.low.u32 %v112
  %v114 = vextract.high.u32 %v112
  %v115 = vmul.u32 %v108, %v99
  %v116 = vadd.s32 %v111, %v113
  %vm117 = vc.u32 %v111, %v113
  %v118 = vadd.s32 %v114, 1
  %v119 = vsel %vm117, %v118, %v114
  %v120 = vadd.s32 %v115, %v119
  %v121 = vadd.s32 %v120, 536870912
  %v122 = vshrl.u32 %v121, 30
  %v123 = vshll.u32 %v122, 30
  %v124 = vsub.s32 %v120, %v123
  %vm125 = vcmp.lt.s32.totalorder %v124, 0
  %v126 = vsub.s32 0, %v124
  %v127 = vsel %vm125, %v126, %v124
  %v128 = vclz %v127
  %v129 = vsub.s32 %v128, 2
  %vm130 = vcmp.gt.s32.totalorder 0, %v129
  %v131 = vsel %vm130, 0, %v129
  %v132 = vsub.s32 32, %v131
  %v133 = vshll.u32 %v124, %v131
  %v134 = vshrl.u32 %v116, %v132
  %v135 = vor.u32 %v133, %v134
  %v136 = vsub.s32 4294967266, %v131
  %v137 = vadd.s32 %v136, 127
  %v138 = vshll.u32 %v137, 23
  %v139 = vor.u32 4788187, %v138
  %v140 = vand.u32 2147483647, %v139
  %v142 = vcvt.s32.f32 %v135
  %v143 = vmul.f32 %v142, %v140
  %v144 = vxor.u32 %v143, 2147483648
  %v145 = vsel %vm62, %v144, %v143
  %v146 = vsub.s32 4, %v122
  %v147 = vsel %vm62, %v146, %v122
  %v148 = vsel %vm61, %v37, %v145
  %v149 = vsel %vm61, 0, %v147
  %v150 = vcosq.f32.pop %v148
  %v151 = vsinq.f32.pop %v148
  %vm152 = vweird.f32 %v37
  %v153 = vadd.s32 %v149, 3
  %v154 = vand.u32 %v153, 3
  %vm155 = vcmp.lt.s32.totalorder %v154, 2
  %vm156 = vcmp.eq.s32.totalorder %v154, 0
  %v157 = vxor.u32 %v151, 2147483648
  %v158 = vsel %vm156, %v150, %v157
  %vm159 = vcmp.eq.s32.totalorder %v154, 2
  %v160 = vxor.u32 %v150, 2147483648
  %v161 = vsel %vm159, %v160, %v151
  %v162 = vsel %vm155, %v158, %v161
  %v163 = vsel %vm152, nan, %v162
  %v164 = vsub.f32 %v59, %v163
  %v165 = vand.u32 2147483647, %v164
  %v166 = vmul.f32 %v35, %v58
  %v167 = vand.u32 2147483647, %v37
  %vm168 = vcmp.le.f32.partialorder %v167, 0.7853982
  %vm169 = vcmp.lt.s32.totalorder %v37, 0
  %v170 = vand.u32 %v37, 2139095040
  %v171 = vshrl.u32 %v170, 23
  %v172 = vsub.s32 %v171, 127
  %v173 = vand.u32 2147483647, %v37
  %v174 = vand.u32 %v173, 8388607
  %v175 = vor.u32 %v174, 8388608
  %v176 = vsub.s32 0, %v175
  %v177 = vadd.s32 %v172, 1
  %vm178 = vcmp.gt.s32.totalorder %v177, 0
  %v179 = vsel %vm178, %v177, 0
  %v180 = vshrl.u32 %v179, 5
  %v181 = vand.u32 %v179, 31
  %v182 = vsub.s32 32, %v181
  %v183 = vshrl.u32 683565275, %v182
  %v184 = vshll.u32 683565275, %v181
  %v185 = vshrl.u32 2475754826, %v182
  %v186 = vor.u32 %v184, %v185
  %v187 = vshll.u32 2475754826, %v181
  %v188 = vshrl.u32 2131351028, %v182
  %v189 = vor.u32 %v187, %v188
  %v190 = vshll.u32 2131351028, %v181
  %v191 = vshrl.u32 2102212464, %v182
  %v192 = vor.u32 %v190, %v191
  %v193 = vshll.u32 2102212464, %v181
  %v194 = vshrl.u32 920167782, %v182
  %v195 = vor.u32 %v193, %v194
  %v196 = vshll.u32 920167782, %v181
  %v197 = vshrl.u32 1326507024, %v182
  %v198 = vor.u32 %v196, %v197
  %vm199 = vcmp.lt.s32.totalorder %v180, 1
  %vm200 = vcmp.lt.s32.totalorder %v180, 2
  %vm201 = vcmp.lt.s32.totalorder %v180, 3
  %vm202 = vcmp.lt.s32.totalorder %v180, 4
  %v203 = vsel %vm199, %v183, %v186
  %v204 = vsel %vm202, %v192, 2102212464
  %v205 = vsel %vm201, %v189, %v204
  %v206 = vsel %vm200, %v203, %v205
  %v207 = vsel %vm199, %v186, %v189
  %v208 = vsel %vm202, %v195, 920167782
  %v209 = vsel %vm201, %v192, %v208
  %v210 = vsel %vm200, %v207, %v209
  %v211 = vsel %vm199, %v189, %v192
  %v212 = vsel %vm202, %v198, 1326507024
  %v213 = vsel %vm201, %v195, %v212
  %v214 = vsel %vm200, %v211, %v213
  %v215 = vshll.u32 %v175, 8
  %v216 = vmul.u32.u64.compose %v215, %v214
  %v217 = vextract.low.u32 %v216
  %v218 = vextract.high.u32 %v216
  %v219 = vmul.u32.u64.compose %v215, %v210
  %v220 = vextract.low.u32 %v219
  %v221 = vextract.high.u32 %v219
  %v222 = vmul.u32 %v215, %v206
  %v223 = vadd.s32 %v218, %v220
  %vm224 = vc.u32 %v218, %v220
  %v225 = vadd.s32 %v221, 1
  %v226 = vsel %vm224, %v225, %v221
  %v227 = vadd.s32 %v222, %v226
  %v228 = vadd.s32 %v227, 536870912
  %v229 = vshrl.u32 %v228, 30
  %v230 = vshll.u32 %v229, 30
  %v231 = vsub.s32 %v227, %v230
  %vm232 = vcmp.lt.s32.totalorder %v231, 0
  %v233 = vsub.s32 0, %v231
  %v234 = vsel %vm232, %v233, %v231
  %v235 = vclz %v234
  %v236 = vsub.s32 %v235, 2
  %vm237 = vcmp.gt.s32.totalorder 0, %v236
  %v238 = vsel %vm237, 0, %v236
  %v239 = vsub.s32 32, %v238
  %v240 = vshll.u32 %v231, %v238
  %v241 = vshrl.u32 %v223, %v239
  %v242 = vor.u32 %v240, %v241
  %v243 = vsub.s32 4294967266, %v238
  %v244 = vadd.s32 %v243, 127
  %v245 = vshll.u32 %v244, 23
  %v246 = vor.u32 4788187, %v245
  %v247 = vand.u32 2147483647, %v246
  %v249 = vcvt.s32.f32 %v242
  %v250 = vmul.f32 %v249, %v247
  %v251 = vxor.u32 %v250, 2147483648
  %v252 = vsel %vm169, %v251, %v250
  %v253 = vsub.s32 4, %v229
  %v254 = vsel %vm169, %v253, %v229
  %v255 = vsel %vm168, %v37, %v252
  %v256 = vsel %vm168, 0, %v254
  %v257 = vcosq.f32.pop %v255
  %v258 = vsinq.f32.pop %v255
  %vm259 = vweird.f32 %v37
  %v260 = vand.u32 %v256, 3
  %vm261 = vcmp.lt.s32.totalorder %v260, 2
  %vm262 = vcmp.eq.s32.totalorder %v260, 0
  %v263 = vxor.u32 %v258, 2147483648
  %v264 = vsel %vm262, %v257, %v263
  %vm265 = vcmp.eq.s32.totalorder %v260, 2
  %v266 = vxor.u32 %v257, 2147483648
  %v267 = vsel %vm265, %v266, %v258
  %v268 = vsel %vm261, %v264, %v267
  %v269 = vsel %vm259, nan, %v268
  %v270 = vsub.f32 %v166, %v269
  %v271 = vand.u32 2147483647, %v270
  %v272 = vadd.f32 %v165, %v271
  %v273 = vld [vmem:[#allocation3] sm:$0xff]
  %v274 = vmul.f32 %v272, %v36
  %v275 = vadd.f32 %v273, %v274
  %276 = vst [vmem:[#allocation3] sm:$0xff] %v275
  %v277 = vld [vmem:[#allocation4] sm:$0xff]
  %v278 = vadd.f32 %v277, %v36
  %279 = vst [vmem:[#allocation4] sm:$0xff] %v278
  // Predicated region
  $region10: #{multibin_loss.1} parent=0 // pred_check
    %p280 = pneg %p25
  $region11: #{multibin_loss.1} parent=0 // pred_check_branch
    %282 = sbr.rel (%p280) target = $region13
  $region12: #{multibin_loss.1} parent=0 // pred_region
    %v283 = vld [vmem:[#allocation2] sm:$0xff]
    %284 = vadd.xlane.f32.xlu0 %v283
    %v285 = vpop.xlane.xlu0 %284
    %v286 = vrot.slane %v285, 4
    %v287 = vadd.f32 %v285, %v286
    %v288 = vrot.slane %v287, 2
    %v289 = vadd.f32 %v287, %v288
    %v290 = vrot.slane %v289, 1
    %v291 = vadd.f32 %v289, %v290
    %s292 = vtos %v291
    %v293 = vld [vmem:[#allocation3] sm:$0xff]
    %294 = vadd.xlane.f32.xlu0 %v293
    %v295 = vpop.xlane.xlu0 %294
    %v296 = vrot.slane %v295, 4
    %v297 = vadd.f32 %v295, %v296
    %v298 = vrot.slane %v297, 2
    %v299 = vadd.f32 %v297, %v298
    %v300 = vrot.slane %v299, 1
    %v301 = vadd.f32 %v299, %v300
    %s302 = vtos %v301
    %v303 = vld [vmem:[#allocation4] sm:$0xff]
    %304 = vadd.xlane.f32.xlu0 %v303
    %v305 = vpop.xlane.xlu0 %304
    %v306 = vrot.slane %v305, 4
    %v307 = vadd.f32 %v305, %v306
    %v308 = vrot.slane %v307, 2
    %v309 = vadd.f32 %v307, %v308
    %v310 = vrot.slane %v309, 1
    %v311 = vadd.f32 %v309, %v310
    %s312 = vtos %v311
    %v313 = vlaneseq
    %v314 = vshrl.u32 %v313, 7
    %v315 = vlaneseq
    %v316 = vand.u32 %v315, 127
    %vm317 = vcmp.eq.s32.totalorder %v314, 0
    %vm318 = vcmp.eq.s32.totalorder %v316, 0
    %vm319 = vmand %vm317, %vm318
    %vm320 = vcmp.eq.s32.totalorder %v316, 1
    %vm321 = vmand %vm317, %vm320
    %vm322 = vcmp.eq.s32.totalorder %v316, 2
    %vm323 = vmand %vm317, %vm322
    %v324 = vstv %s312
    %v325 = vsel %vm323, %v324, 0.0
    %v326 = vstv %s302
    %v327 = vsel %vm321, %v326, %v325
    %v328 = vstv %s292
    %v329 = vsel %vm319, %v328, %v327
    %330 = vst [vmem:[%s1] sm:$0xff] %v329
  $region13: #{multibin_loss.1} parent=0 // pred_fallthru
    _
  // Predicated region
  $region14: #{multibin_loss.1} parent=0 // pred_check
    _
  $region15: #{multibin_loss.1} parent=0 // pred_check_branch
    %332 = sbr.rel (0) target = $region17
  $region16: #{multibin_loss.1} parent=0 // pred_region
    _
  $region17: #{multibin_loss.1} parent=0 // pred_fallthru
    _
  // Predicated region
  $region18: #{multibin_loss.1} parent=0 // pred_check
    _
  $region19: #{multibin_loss.1} parent=0 // pred_check_branch
    %334 = sbr.rel (0) target = $region21
  $region20: #{multibin_loss.1} parent=0 // pred_region
    _
  $region21: #{multibin_loss.1} parent=0 // pred_fallthru
    _

</llo_original>
